<compile_context>
chip_gen: v6e
topology: v6e:2x2x1
jax: 0.10.0
libtpu: 0.0.40
codegen_flags: <defaults>
</compile_context>

<pallas_src>
import jax
import jax.numpy as jnp
from jax.experimental import pallas as pl
from jax.experimental.pallas import tpu as pltpu


def _round_up(x: int, m: int) -> int:
    return ((x + m - 1) // m) * m


def _cdiv(a: int, b: int) -> int:
    return (a + b - 1) // b


def _spmm_kernel(kids_ref, nsteps_ref, b_ref, a_ref, o_ref):
    """out[i, j] (+)= B[i, kid] @ A[kid, j], skipping all-zero K-blocks of B.

    kids_ref / nsteps_ref are scalar-prefetch SMEM refs holding the per-row
    block schedule.  The output block index is (i, j) for every k, so o_ref is
    VMEM-resident across the whole K loop and doubles as the f32 accumulator.
    """
    i = pl.program_id(0)
    k = pl.program_id(2)
    n_real = nsteps_ref[i]

    # Row block with no nonzero K-blocks at all: just zero the output once.
    @pl.when(jnp.logical_and(k == 0, n_real == 0))
    def _zero_empty_row_block():
        o_ref[...] = jnp.zeros_like(o_ref)

    # First real K-block: store directly (saves a full tm x tn zero + read).
    @pl.when(jnp.logical_and(k == 0, n_real > 0))
    def _first_real_block():
        o_ref[...] = jnp.dot(
            b_ref[...], a_ref[...], preferred_element_type=jnp.float32
        )

    # Remaining real K-blocks: accumulate.  Padded steps (k >= n_real) repeat
    # the previous block id, so they cost neither DMA nor MXU work.
    @pl.when(jnp.logical_and(k > 0, k < n_real))
    def _accumulate():
        o_ref[...] += jnp.dot(
            b_ref[...], a_ref[...], preferred_element_type=jnp.float32
        )


def _build_block_schedule(b_padded, tm, tk):
    """On-device (jittable) per-M-row-block schedule of nonzero K-blocks.

    Returns:
      kids   : int32[num_i * num_k] — for row block i, kids[i*num_k + s] is the
               s-th K-block index to visit; entries past nsteps[i] repeat the
               last valid id (no redundant DMA on skipped steps).
      nsteps : int32[num_i]         — number of real (nonzero) K-blocks.
    """
    mp, kp = b_padded.shape
    num_i, num_k = mp // tm, kp // tk
    occ = (b_padded.reshape(num_i, tm, num_k, tk) != 0).any(axis=(1, 3))
    nsteps = occ.sum(axis=1).astype(jnp.int32)
    # Stable argsort of "not occupied" compacts nonzero block ids to the front
    # in ascending order (jnp.argsort is stable by default).
    order = jnp.argsort(jnp.logical_not(occ).astype(jnp.int32), axis=1)
    order = order.astype(jnp.int32)
    last = jnp.take_along_axis(order, jnp.maximum(nsteps - 1, 0)[:, None], axis=1)
    pos = jnp.arange(num_k, dtype=jnp.int32)[None, :]
    kids = jnp.where(pos < nsteps[:, None], order, last)
    return kids.reshape(-1), nsteps


def embedding_aggregation_matmul(matrix_b, matrix_a, *, tm=512, tn=2048, tk=512):
    """out = matrix_b @ matrix_a (float32) — tiled Pallas TPU kernel with bf16
    MXU feeds and sparsity-aware K-block skipping (static grid, jit-safe)."""
    M, K = matrix_b.shape
    K2, N = matrix_a.shape
    assert K == K2, "inner dimensions must match"

    # ---- tile selection (hardware-legal + low padding waste) -----------------
    # tm: multiple of 16 (bf16 sublane packing); balance row blocks so the last
    # one is not mostly padding.
    tm = _round_up(max(16, min(tm, _round_up(M, 16))), 16)
    tm = _round_up(_cdiv(M, _cdiv(M, tm)), 16)
    # tk / tn: multiples of 128 (lane axis); tn spans the whole embedding dim
    # for typical sizes so B tiles are fetched exactly once.
    tk = _round_up(max(128, min(tk, _round_up(K, 128))), 128)
    tn = _round_up(max(128, min(tn, _round_up(N, 128))), 128)

    mp, kp, np_ = _round_up(M, tm), _round_up(K, tk), _round_up(N, tn)
    num_i, num_j, num_k = mp // tm, np_ // tn, kp // tk

    # v7x has 2 TensorCores; give the parallel axes >= 2 blocks when possible
    # (costs only one extra short grid step on single-TC v5e/v6e).
    if num_i * num_j == 1 and M >= 32:
        tm = _round_up(_cdiv(M, 2), 16)
        mp = _round_up(M, tm)
        num_i = mp // tm

    # ---- pad (only if needed), build schedule, cast operands to bf16 ---------
    b_pad = matrix_b if (mp, kp) == (M, K) else jnp.pad(
        matrix_b, ((0, mp - M), (0, kp - K)))
    a_pad = matrix_a if (kp, np_) == (K, N) else jnp.pad(
        matrix_a, ((0, kp - K), (0, np_ - N)))

    kids, nsteps = _build_block_schedule(b_pad, tm, tk)  # on-device, static shape

    b_p = b_pad.astype(jnp.bfloat16)
    a_p = a_pad.astype(jnp.bfloat16)

    # ---- advisory cost estimate + explicit VMEM budget ------------------------
    cost = pl.CostEstimate(
        flops=2 * mp * np_ * kp,
        transcendentals=0,
        bytes_accessed=(mp * kp * 2) + (num_i * kp * np_ * 2) + (mp * np_ * 4),
    )
    buffered_bytes = 2 * (tm * tk * 2 + tk * tn * 2) + 2 * (tm * tn * 4)
    vmem_limit = int(min(max(3 * buffered_bytes, 32 * 1024 * 1024),
                         48 * 1024 * 1024))

    # index_maps receive the scalar-prefetch SMEM refs as trailing args.
    def b_map(i, j, k, kids_ref, nsteps_ref):
        return (i, kids_ref[i * num_k + k])

    def a_map(i, j, k, kids_ref, nsteps_ref):
        return (kids_ref[i * num_k + k], j)

    def o_map(i, j, k, kids_ref, nsteps_ref):
        return (i, j)

    out_p = pl.pallas_call(
        _spmm_kernel,
        out_shape=jax.ShapeDtypeStruct((mp, np_), jnp.float32),
        grid_spec=pltpu.PrefetchScalarGridSpec(
            num_scalar_prefetch=2,
            grid=(num_i, num_j, num_k),
            in_specs=[
                pl.BlockSpec((tm, tk), b_map),   # B tile (data-dependent k)
                pl.BlockSpec((tk, tn), a_map),   # A tile (data-dependent k)
            ],
            out_specs=pl.BlockSpec((tm, tn), o_map),
        ),
        compiler_params=pltpu.CompilerParams(
            dimension_semantics=("parallel", "parallel", "arbitrary"),
            vmem_limit_bytes=vmem_limit,
        ),
        cost_estimate=cost,
    )(kids, nsteps, b_p, a_p)

    if (mp, np_) != (M, N):
        return out_p[:M, :N]
    return out_p


class EmbeddingAggregationPallas:
    """JAX/Pallas equivalent of the PyTorch EmbeddingAggregation module."""

    def __init__(self, matrix_a):
        self.matrix_a = jnp.asarray(matrix_a)  # (num_embeddings, embedding_dim)
        self.num_embeddings, self.embedding_dim = self.matrix_a.shape

    def __call__(self, matrix_b):
        # matrix_b is the "sparse" (M, num_embeddings) operand materialised as a
        # dense mostly-zero array; the gather + weighted index_add_ of the torch
        # forward is exactly matrix_b @ matrix_a.
        return embedding_aggregation_matmul(matrix_b, self.matrix_a)


if __name__ == "__main__":
    key = jax.random.PRNGKey(0)
    k_a, k_b, k_mask = jax.random.split(key, 3)

    # Small shapes implied by the module: B is (batch_rows, num_embeddings),
    # A is the (num_embeddings, embedding_dim) table.  Not tile-aligned on
    # purpose, to exercise the padding path.
    M, K, N = 72, 384, 100

    matrix_a = jax.random.normal(k_a, (K, N), dtype=jnp.float32)

    # ~90%-sparse B; additionally only embedding ids < 200 are ever used.
    dense_vals = jax.random.normal(k_b, (M, K), dtype=jnp.float32)
    keep = jax.random.uniform(k_mask, (M, K)) < 0.10
    matrix_b = jnp.where(keep, dense_vals, 0.0)
    matrix_b = jnp.where(jnp.arange(K)[None, :] < 200, matrix_b, 0.0)

    module = EmbeddingAggregationPallas(matrix_a)
    fwd = jax.jit(lambda b: module(b))       # fully jittable: grid is static
    out = jax.block_until_ready(fwd(matrix_b))

    assert out.shape == (M, N)
    assert out.dtype == jnp.float32

    # Kernel-machinery check: reference with the same operand precision
    # (bf16-rounded operands, f32 accumulation) must match tightly.
    b16 = matrix_b.astype(jnp.bfloat16).astype(jnp.float32)
    a16 = matrix_a.astype(jnp.bfloat16).astype(jnp.float32)
    ref_bf16 = b16 @ a16
    assert jnp.allclose(out, ref_bf16, atol=1e-3, rtol=1e-3), "mismatch vs bf16 ref"

    # Semantics check vs. full-f32 math (loose: only bf16 operand rounding).
    ref_f32 = matrix_b @ matrix_a
    assert jnp.allclose(out, ref_f32, atol=0.3, rtol=0.05), "mismatch vs f32 ref"

    print("KERNEL_OK")
</pallas_src>

<mosaic_0001>
module attributes {stable_mosaic.version = 11 : i64} {
  func.func @_spmm_kernel(%arg0: i32, %arg1: i32, %arg2: i32, %arg3: memref<2xi32, #tpu.memory_space<smem>>, %arg4: memref<2xi32, #tpu.memory_space<smem>>, %arg5: memref<48x384xbf16, #tpu.memory_space<vmem>>, %arg6: memref<384x128xbf16, #tpu.memory_space<vmem>>, %arg7: memref<48x128xf32, #tpu.memory_space<vmem>>) attributes {dimension_semantics = [#tpu.dimension_semantics<parallel>, #tpu.dimension_semantics<parallel>, #tpu.dimension_semantics<arbitrary>], iteration_bounds = array<i64: 2, 1, 1>, scalar_prefetch = 2 : i64, scratch_operands = 0 : i64, tpu.core_type = #tpu.core_type<tc>, window_params = [{transform_indices = @transform_0, window_bounds = array<i64: 48, 384>}, {transform_indices = @transform_1, window_bounds = array<i64: 384, 128>}, {transform_indices = @transform_2, window_bounds = array<i64: 48, 128>}]} {
    %0 = arith.index_cast %arg0 : i32 to index
    %1 = memref.load %arg4[%0] : memref<2xi32, #tpu.memory_space<smem>>
    %c0_i32 = arith.constant 0 : i32
    %2 = arith.cmpi eq, %arg2, %c0_i32 : i32
    %c0_i32_0 = arith.constant 0 : i32
    %3 = arith.cmpi eq, %1, %c0_i32_0 : i32
    %4 = arith.andi %2, %3 : i1
    %5 = arith.extui %4 : i1 to i32
    %c0_i32_1 = arith.constant 0 : i32
    %6 = arith.cmpi ne, %5, %c0_i32_1 : i32
    scf.if %6 {
      %cst = arith.constant 0.000000e+00 : f32
      %17 = vector.broadcast %cst : f32 to vector<48x128xf32>
      %c0 = arith.constant 0 : index
      %c0_7 = arith.constant 0 : index
      %18 = vector.load %arg7[%c0, %c0_7] : memref<48x128xf32, #tpu.memory_space<vmem>>, vector<48x128xf32>
      tpu.vector_store %arg7[%c0, %c0_7], %17 {strides = array<i32>} : memref<48x128xf32, #tpu.memory_space<vmem>>, vector<48x128xf32>,
    } else {
    }
    %c0_i32_2 = arith.constant 0 : i32
    %7 = arith.cmpi eq, %arg2, %c0_i32_2 : i32
    %c0_i32_3 = arith.constant 0 : i32
    %8 = arith.cmpi sgt, %1, %c0_i32_3 : i32
    %9 = arith.andi %7, %8 : i1
    %10 = arith.extui %9 : i1 to i32
    %c0_i32_4 = arith.constant 0 : i32
    %11 = arith.cmpi ne, %10, %c0_i32_4 : i32
    scf.if %11 {
      %c0 = arith.constant 0 : index
      %c0_7 = arith.constant 0 : index
      %17 = vector.load %arg5[%c0, %c0_7] : memref<48x384xbf16, #tpu.memory_space<vmem>>, vector<48x384xbf16>
      %c0_8 = arith.constant 0 : index
      %c0_9 = arith.constant 0 : index
      %18 = vector.load %arg6[%c0_8, %c0_9] : memref<384x128xbf16, #tpu.memory_space<vmem>>, vector<384x128xbf16>
      %cst = arith.constant dense<0.000000e+00> : vector<48x128xf32>
      %19 = tpu.matmul %17, %18, %cst {dimension_numbers = #tpu.dot_dimension_numbers<[1], [0], [0], [1], [0, 0, 1, 1], [], []>} : vector<48x384xbf16>, vector<384x128xbf16>, vector<48x128xf32> -> vector<48x128xf32>
      %c0_10 = arith.constant 0 : index
      %c0_11 = arith.constant 0 : index
      %20 = vector.load %arg7[%c0_10, %c0_11] : memref<48x128xf32, #tpu.memory_space<vmem>>, vector<48x128xf32>
      tpu.vector_store %arg7[%c0_10, %c0_11], %19 {strides = array<i32>} : memref<48x128xf32, #tpu.memory_space<vmem>>, vector<48x128xf32>,
    } else {
    }
    %c0_i32_5 = arith.constant 0 : i32
    %12 = arith.cmpi sgt, %arg2, %c0_i32_5 : i32
    %13 = arith.cmpi slt, %arg2, %1 : i32
    %14 = arith.andi %12, %13 : i1
    %15 = arith.extui %14 : i1 to i32
    %c0_i32_6 = arith.constant 0 : i32
    %16 = arith.cmpi ne, %15, %c0_i32_6 : i32
    scf.if %16 {
      %c0 = arith.constant 0 : index
      %c0_7 = arith.constant 0 : index
      %17 = vector.load %arg7[%c0, %c0_7] : memref<48x128xf32, #tpu.memory_space<vmem>>, vector<48x128xf32>
      %c0_8 = arith.constant 0 : index
      %c0_9 = arith.constant 0 : index
      %18 = vector.load %arg5[%c0_8, %c0_9] : memref<48x384xbf16, #tpu.memory_space<vmem>>, vector<48x384xbf16>
      %c0_10 = arith.constant 0 : index
      %c0_11 = arith.constant 0 : index
      %19 = vector.load %arg6[%c0_10, %c0_11] : memref<384x128xbf16, #tpu.memory_space<vmem>>, vector<384x128xbf16>
      %cst = arith.constant dense<0.000000e+00> : vector<48x128xf32>
      %20 = tpu.matmul %18, %19, %cst {dimension_numbers = #tpu.dot_dimension_numbers<[1], [0], [0], [1], [0, 0, 1, 1], [], []>} : vector<48x384xbf16>, vector<384x128xbf16>, vector<48x128xf32> -> vector<48x128xf32>
      %21 = arith.addf %17, %20 : vector<48x128xf32>
      %c0_12 = arith.constant 0 : index
      %c0_13 = arith.constant 0 : index
      %22 = vector.load %arg7[%c0_12, %c0_13] : memref<48x128xf32, #tpu.memory_space<vmem>>, vector<48x128xf32>
      tpu.vector_store %arg7[%c0_12, %c0_13], %21 {strides = array<i32>} : memref<48x128xf32, #tpu.memory_space<vmem>>, vector<48x128xf32>,
    } else {
    }
    return
  }
  func.func @transform_0(%arg0: i32, %arg1: i32, %arg2: i32, %arg3: memref<2xi32, #tpu.memory_space<smem>>, %arg4: memref<2xi32, #tpu.memory_space<smem>>) -> (i32, i32) {
    %c1_i32 = arith.constant 1 : i32
    %0 = arith.muli %arg0, %c1_i32 : i32
    %1 = arith.addi %0, %arg2 : i32
    %2 = arith.index_cast %1 : i32 to index
    %3 = memref.load %arg3[%2] : memref<2xi32, #tpu.memory_space<smem>>
    %c0_i32 = arith.constant 0 : i32
    return %arg0, %3 : i32, i32
  }
  func.func @transform_1(%arg0: i32, %arg1: i32, %arg2: i32, %arg3: memref<2xi32, #tpu.memory_space<smem>>, %arg4: memref<2xi32, #tpu.memory_space<smem>>) -> (i32, i32) {
    %c1_i32 = arith.constant 1 : i32
    %0 = arith.muli %arg0, %c1_i32 : i32
    %1 = arith.addi %0, %arg2 : i32
    %2 = arith.index_cast %1 : i32 to index
    %3 = memref.load %arg3[%2] : memref<2xi32, #tpu.memory_space<smem>>
    %c0_i32 = arith.constant 0 : i32
    return %3, %arg1 : i32, i32
  }
  func.func @transform_2(%arg0: i32, %arg1: i32, %arg2: i32, %arg3: memref<2xi32, #tpu.memory_space<smem>>, %arg4: memref<2xi32, #tpu.memory_space<smem>>) -> (i32, i32) {
    %c0_i32 = arith.constant 0 : i32
    return %arg0, %arg1 : i32, i32
  }
}

</mosaic_0001>

<llo_original>
// kernel: _lambda_.1
$region0: #{_lambda_.1}
  #allocation0 [shape = 'u32[]', space=smem, size = 0x4, offset = 0x4, fixed_abs, tag = 'smem constant byte address 0x4 - core index']
  #allocation1 [shape = 'u32[144,128]{1,0:T(1,128)}', space=vmem, size = 0x12000, scoped, tag = 'internal scratch']
  #allocation2 [shape = 's32[1]{0}', space=sflag, size = 0x4, scoped, tag = 'scoped memory for _lambda_.1']
  #allocation3 [shape = 'u8[512]{0}', space=smem, size = 0x200, scoped, tag = 'prefetched SMEM operand 0']
  #allocation4 [shape = 'u8[512]{0}', space=smem, size = 0x200, scoped, tag = 'prefetched SMEM operand 1']
  %s0 = inlined_call_operand.vmem [shape: s32[2], index: 0, kind: input, shape index: {}]
  %s1 = inlined_call_operand.vmem [shape: s32[2], index: 1, kind: input, shape index: {}]
  %s2 = inlined_call_operand.vmem [shape: bf16[96,384], index: 2, kind: input, shape index: {}]
  %s3 = inlined_call_operand.vmem [shape: bf16[384,128], index: 3, kind: input, shape index: {}]
  %s4 = inlined_call_operand.vmem [shape: f32[96,128], index: 4, kind: output, shape index: {}]
  %s5 = sld [smem:[#allocation0]]
  $region53: #{_lambda_.1} parent=0
    _
  %s7 = ssub.s32 1, %s5
  %s8 = scalar_select 0, %s7, %s5
  %s9 = sshll.u32 %s0, 4
  %s10 = int_to_ptr.vmem [resolvable:$true] %s9
  %12 = dma.vmem_to_smem %s10, 16, [#allocation3], [#allocation2]
  %s13 = sshll.u32 %s1, 4
  %s14 = int_to_ptr.vmem [resolvable:$true] %s13
  %16 = dma.vmem_to_smem %s14, 16, [#allocation4], [#allocation2]
  %17 = dma.done [#allocation2], 32
  %18 = sfence
  loop: start=0, step=1, limit=4
  $region2: #{_lambda_.1} parent=0 // loop_pre_header
    _
  $region3: #{_lambda_.1} parent=0 // loop_header
    %s20 = sphi 0, %s24
    %p21 = scmp.ge.s32.totalorder %s20, 4
    %s27 = sphi 0, %s46
    %s28 = sphi 0, %s42
    %s29 = sphi 0, %s38
    %s30 = sphi 0, %s27
    %s31 = sphi 0, %s28
    %s32 = sphi 0, %s29
    %s33 = sphi 0, %s30
    %s34 = sphi 0, %s31
    %s35 = sphi 0, %s32
    %s55 = sphi 0, %s57
    %s58 = sphi 0, %s55
    %s59 = sphi 0, %s58
    %s75 = sphi 0, %s59
    %s87 = sphi 0, %s89
    %s90 = sphi 0, %s87
    %s91 = sphi 0, %s90
    %s107 = sphi 0, %s91
    %s115 = sphi 0, %s117
    %s118 = sphi 0, %s115
    %s119 = sphi 0, %s118
    %s135 = sphi 0, %s119
  $region4: #{_lambda_.1} parent=0 // loop_header_branch
    %23 = sbr.rel (%p21) target = $region8
  $region5: #{_lambda_.1} parent=0 // loop_body
    %s25 = ssub.s32 %s20, 1
    %s26 = ssub.s32 %s20, 2
    %s36 = sadd.s32 1, %s29
    %p37 = scmp.ge.s32.totalorder %s36, 1
    %s38 = scalar_select %p37, 0, %s36
    %s39 = sadd.s32 1, %s28
    %s40 = scalar_select %p37, %s39, %s28
    %p41 = scmp.ge.s32.totalorder %s40, 1
    %s42 = scalar_select %p41, 0, %s40
    %s43 = sadd.s32 1, %s27
    %s44 = scalar_select %p41, %s43, %s27
    %p45 = scmp.ge.s32.totalorder %s44, 2
    %s46 = scalar_select %p45, 0, %s44
    %s47 = sadd.s32 %s27, %s29
    %s48 = sld [smem:[#allocation3 + %s47]]
    %s49 = sadd.s32 %s46, %s38
    %s50 = sld [smem:[#allocation3 + %s49]]
    %s51 = ssub.s32 %s27, %s46
    %s52 = ssub.s32 %s48, %s50
    %s53 = sor.u32 %s51, %s52
    %p54 = scmp.eq.s32.totalorder %s53, 0
    %s56 = sadd.s32 %s55, 1
    %s57 = scalar_select %p54, %s55, %s56
    %p60 = pneg %p54
    %p61 = scmp.eq.s32.totalorder %s20, 1
    %p62 = por %p60, %p61
    %p63 = scmp.ne.s32.totalorder %s55, %s58
    %p64 = scmp.eq.s32.totalorder %s20, 0
    %p65 = por %p63, %p64
    %p66 = scmp.ne.s32.totalorder %s55, %s58
    %p67 = scmp.eq.s32.totalorder %s25, 1
    %p68 = por %p66, %p67
    %p69 = scmp.ne.s32.totalorder %s58, %s59
    %p70 = scmp.eq.s32.totalorder %s25, 0
    %p71 = por %p69, %p70
    %p72 = scmp.ne.s32.totalorder %s58, %s59
    %p73 = scmp.eq.s32.totalorder %s26, 1
    %p74 = por %p72, %p73
    %p76 = scmp.ne.s32.totalorder %s59, %s75
    %p77 = scmp.eq.s32.totalorder %s26, 0
    %p78 = por %p76, %p77
    %s79 = sadd.s32 %s27, %s29
    %s80 = sld [smem:[#allocation3 + %s79]]
    %s81 = sadd.s32 %s46, %s38
    %s82 = sld [smem:[#allocation3 + %s81]]
    %s83 = ssub.s32 %s80, %s82
    %s84 = ssub.s32 %s28, %s42
    %s85 = sor.u32 %s83, %s84
    %p86 = scmp.eq.s32.totalorder %s85, 0
    %s88 = sadd.s32 %s87, 1
    %s89 = scalar_select %p86, %s87, %s88
    %p92 = pneg %p86
    %p93 = scmp.eq.s32.totalorder %s20, 1
    %p94 = por %p92, %p93
    %p95 = scmp.ne.s32.totalorder %s87, %s90
    %p96 = scmp.eq.s32.totalorder %s20, 0
    %p97 = por %p95, %p96
    %p98 = scmp.ne.s32.totalorder %s87, %s90
    %p99 = scmp.eq.s32.totalorder %s25, 1
    %p100 = por %p98, %p99
    %p101 = scmp.ne.s32.totalorder %s90, %s91
    %p102 = scmp.eq.s32.totalorder %s25, 0
    %p103 = por %p101, %p102
    %p104 = scmp.ne.s32.totalorder %s90, %s91
    %p105 = scmp.eq.s32.totalorder %s26, 1
    %p106 = por %p104, %p105
    %p108 = scmp.ne.s32.totalorder %s91, %s107
    %p109 = scmp.eq.s32.totalorder %s26, 0
    %p110 = por %p108, %p109
    %s111 = ssub.s32 %s27, %s46
    %s112 = ssub.s32 %s28, %s42
    %s113 = sor.u32 %s111, %s112
    %p114 = scmp.eq.s32.totalorder %s113, 0
    %s116 = sadd.s32 %s115, 1
    %s117 = scalar_select %p114, %s115, %s116
    %p120 = pneg %p114
    %p121 = scmp.eq.s32.totalorder %s20, 1
    %p122 = por %p120, %p121
    %p123 = scmp.ne.s32.totalorder %s115, %s118
    %p124 = scmp.eq.s32.totalorder %s20, 0
    %p125 = por %p123, %p124
    %p126 = scmp.ne.s32.totalorder %s115, %s118
    %p127 = scmp.eq.s32.totalorder %s25, 1
    %p128 = por %p126, %p127
    %p129 = scmp.ne.s32.totalorder %s118, %s119
    %p130 = scmp.eq.s32.totalorder %s25, 0
    %p131 = por %p129, %p130
    %p132 = scmp.ne.s32.totalorder %s118, %s119
    %p133 = scmp.eq.s32.totalorder %s26, 1
    %p134 = por %p132, %p133
    %p136 = scmp.ne.s32.totalorder %s119, %s135
    %p137 = scmp.eq.s32.totalorder %s26, 0
    %p138 = por %p136, %p137
    %p139 = scmp.le.s32.totalorder 1, %s20
    %p140 = scmp.lt.s32.totalorder %s20, 3
    %p141 = pnand %p139, %p140
    %p142 = pneg %p141
    // Predicated region
    $region9: #{_lambda_.1} parent=5 // pred_check
      _
    $region10: #{_lambda_.1} parent=5 // pred_check_branch
      %144 = sbr.rel (%p141) target = $region12
    $region11: #{_lambda_.1} parent=5 // pred_region
      %s145 = ssub.s32 %s20, 1
    $region12: #{_lambda_.1} parent=5 // pred_fallthru
      _
    %p146 = scmp.lt.s32.totalorder %s20, 2
    // Predicated region
    $region13: #{_lambda_.1} parent=5 // pred_check
      %p147 = pneg %p146
    $region14: #{_lambda_.1} parent=5 // pred_check_branch
      %149 = sbr.rel (%p147) target = $region16
    $region15: #{_lambda_.1} parent=5 // pred_region
      // Predicated region
      $region17: #{_lambda_.1} parent=15 // pred_check
        %p150 = pneg %p65
      $region18: #{_lambda_.1} parent=15 // pred_check_branch
        %152 = sbr.rel (%p150) target = $region20
      $region19: #{_lambda_.1} parent=15 // pred_region
        %s153 = sadd.s32 %s27, %s29
        %s154 = sld [smem:[#allocation3 + %s153]]
        %s155 = smul.u32 6, %s27
        %s156 = smul.u32 3, %s154
        %p157 = scmp.lt.s32.totalorder %s155, 11
        %s158 = scalar_select %p157, %s155, 11
        %p159 = scmp.lt.s32.totalorder %s156, 2
        %s160 = scalar_select %p159, %s156, 2
        %s161 = smul.addr %s158, 3
        %s162 = sadd.s32 %s160, %s161
        %s163 = smul.addr %s162, 4
        %s164 = scalar_lea.vmem %s2, %s163
        %s165 = sadd.s32 %s27, %s29
        %s166 = sld [smem:[#allocation3 + %s165]]
        %s167 = smul.u32 6, %s27
        %s168 = smul.u32 3, %s166
      $region20: #{_lambda_.1} parent=15 // pred_fallthru
        _
      // Predicated region
      $region21: #{_lambda_.1} parent=15 // pred_check
        %p169 = pneg %p97
      $region22: #{_lambda_.1} parent=15 // pred_check_branch
        %171 = sbr.rel (%p169) target = $region24
      $region23: #{_lambda_.1} parent=15 // pred_region
        %s172 = sadd.s32 %s27, %s29
        %s173 = sld [smem:[#allocation3 + %s172]]
        %s174 = smul.u32 48, %s173
        %p175 = scmp.lt.s32.totalorder %s174, 47
        %s176 = scalar_select %p175, %s174, 47
        %p177 = scmp.lt.s32.totalorder %s28, 0
        %s178 = scalar_select %p177, %s28, 0
        %s179 = sadd.s32 %s178, %s176
        %s180 = smul.addr %s179, 4
        %s181 = scalar_lea.vmem %s3, %s180
        %s182 = sadd.s32 %s27, %s29
        %s183 = sld [smem:[#allocation3 + %s182]]
        %s184 = smul.u32 48, %s183
      $region24: #{_lambda_.1} parent=15 // pred_fallthru
        _
    $region16: #{_lambda_.1} parent=5 // pred_fallthru
      _
    %p185 = scmp.le.s32.totalorder 1, %s20
    %p186 = scmp.lt.s32.totalorder %s20, 3
    %p187 = pnand %p185, %p186
    %p188 = pneg %p187
    // Predicated region
    $region25: #{_lambda_.1} parent=5 // pred_check
      _
    $region26: #{_lambda_.1} parent=5 // pred_check_branch
      %190 = sbr.rel (%p187) target = $region28
    $region27: #{_lambda_.1} parent=5 // pred_region
      %s191 = ssub.s32 %s20, 1
      %s192 = sadd.s32 %s30, %s32
      %s193 = sld [smem:[#allocation3 + %s192]]
      %s194 = smul.u32 6, %s30
      %s195 = smul.u32 3, %s193
      %p196 = scmp.lt.s32.totalorder %s194, 11
      %s197 = scalar_select %p196, %s194, 11
      %p198 = scmp.lt.s32.totalorder %s195, 2
      %s199 = scalar_select %p198, %s195, 2
      %s200 = smul.addr %s197, 3
      %s201 = sadd.s32 %s199, %s200
      %s202 = smul.addr %s201, 4
      %s203 = scalar_lea.vmem %s2, %s202
      %p204 = pneg %p71
      %p205 = pneg %p68
      %s206 = sadd.s32 %s30, %s32
      %s207 = sld [smem:[#allocation3 + %s206]]
      %s208 = smul.u32 48, %s207
      %p209 = scmp.lt.s32.totalorder %s208, 47
      %s210 = scalar_select %p209, %s208, 47
      %p211 = scmp.lt.s32.totalorder %s31, 0
      %s212 = scalar_select %p211, %s31, 0
      %s213 = sadd.s32 %s212, %s210
      %s214 = smul.addr %s213, 4
      %s215 = scalar_lea.vmem %s3, %s214
      %p216 = pneg %p103
      %p217 = pneg %p100
      %p218 = pneg %p131
      %p219 = pneg %p128
      %s220 = smul.u32 6, %s30
      %p221 = scmp.lt.s32.totalorder %s220, 11
      %s222 = scalar_select %p221, %s220, 11
      %p223 = scmp.lt.s32.totalorder %s31, 0
      %s224 = scalar_select %p223, %s31, 0
      %s225 = sadd.s32 %s224, %s222
      %s226 = smul.addr %s225, 8
      %s227 = scalar_lea.vmem %s4, %s226
      %s228 = sadd.s32 %s30, %s32
      %s229 = sld [smem:[#allocation3 + %s228]]
      %s230 = smul.u32 6, %s30
      %s231 = smul.u32 3, %s229
      %p232 = scmp.lt.s32.totalorder %s230, 11
      %s233 = scalar_select %p232, %s230, 11
      %p234 = scmp.lt.s32.totalorder %s231, 2
      %s235 = scalar_select %p234, %s231, 2
      %s236 = smul.addr %s233, 3
      %s237 = sadd.s32 %s235, %s236
      %s238 = smul.addr %s237, 4
      %s239 = scalar_lea.vmem %s2, %s238
      %s240 = sadd.s32 %s30, %s32
      %s241 = sld [smem:[#allocation3 + %s240]]
      %s242 = smul.u32 6, %s30
      %s243 = smul.u32 3, %s241
      %s244 = sadd.s32 %s30, %s32
      %s245 = sld [smem:[#allocation3 + %s244]]
      %s246 = smul.u32 48, %s245
      %p247 = scmp.lt.s32.totalorder %s246, 47
      %s248 = scalar_select %p247, %s246, 47
      %p249 = scmp.lt.s32.totalorder %s31, 0
      %s250 = scalar_select %p249, %s31, 0
      %s251 = sadd.s32 %s250, %s248
      %s252 = smul.addr %s251, 4
      %s253 = scalar_lea.vmem %s3, %s252
      %s254 = sadd.s32 %s30, %s32
      %s255 = sld [smem:[#allocation3 + %s254]]
      %s256 = smul.u32 48, %s255
      %s257 = smul.u32 6, %s30
      %p258 = scmp.lt.s32.totalorder %s257, 11
      %s259 = scalar_select %p258, %s257, 11
      %p260 = scmp.lt.s32.totalorder %s31, 0
      %s261 = scalar_select %p260, %s31, 0
      %s262 = sadd.s32 %s261, %s259
      %s263 = smul.addr %s262, 8
      %s264 = scalar_lea.vmem %s4, %s263
      %s265 = smul.u32 6, %s30
      %s267 = sld [smem:[#allocation4 + %s30]]
      %p268 = scmp.eq.s32.totalorder %s32, 0
      %p269 = scmp.eq.s32.totalorder %s267, 0
      %p270 = pnand %p268, %p269
      %p271 = pneg %p270
      // Predicated region
      $region29: #{_lambda_.1} parent=27 // pred_check
        _
      $region30: #{_lambda_.1} parent=27 // pred_check_branch
        %273 = sbr.rel (%p270) target = $region32
      $region31: #{_lambda_.1} parent=27 // pred_region
        %274 = vst [vmem:[%s264] sm:$0xff] 0.0
        %275 = vst [vmem:[%s264 + $0x8] sm:$0xff] 0.0
        %276 = vst [vmem:[%s264 + $0x10] sm:$0xff] 0.0
        %277 = vst [vmem:[%s264 + $0x18] sm:$0xff] 0.0
        %278 = vst [vmem:[%s264 + $0x20] sm:$0xff] 0.0
        %279 = vst [vmem:[%s264 + $0x28] sm:$0xff] 0.0
      $region32: #{_lambda_.1} parent=27 // pred_fallthru
        _
      %p280 = scmp.gt.s32.totalorder %s267, 0
      %p281 = pnand %p268, %p280
      %p282 = pneg %p281
      // Predicated region
      $region33: #{_lambda_.1} parent=27 // pred_check
        _
      $region34: #{_lambda_.1} parent=27 // pred_check_branch
        %284 = sbr.rel (%p281) target = $region36
      $region35: #{_lambda_.1} parent=27 // pred_region
        %v285 = vld [vmem:[%s239] sm:$0xff]
        %v286 = vld [vmem:[%s239 + $0x8] sm:$0xf]
        %v287 = vld [vmem:[%s239 + $0xc] sm:$0xff]
        %v288 = vld [vmem:[%s239 + $0x14] sm:$0xf]
        %v289 = vld [vmem:[%s239 + $0x18] sm:$0xff]
        %v290 = vld [vmem:[%s239 + $0x20] sm:$0xf]
        %v291 = vld [vmem:[%s239 + $0x24] sm:$0xff]
        %v292 = vld [vmem:[%s239 + $0x2c] sm:$0xf]
        %v293 = vld [vmem:[%s239 + $0x30] sm:$0xff]
        %v294 = vld [vmem:[%s239 + $0x38] sm:$0xf]
        %v295 = vld [vmem:[%s239 + $0x3c] sm:$0xff]
        %v296 = vld [vmem:[%s239 + $0x44] sm:$0xf]
        %v297 = vld [vmem:[%s253] sm:$0xf]
        %v298 = vld [vmem:[%s253 + $0x4] sm:$0xf]
        %v299 = vld [vmem:[%s253 + $0x8] sm:$0xf]
        %v300 = vld [vmem:[%s253 + $0xc] sm:$0xf]
        %v301 = vld [vmem:[%s253 + $0x10] sm:$0xf]
        %v302 = vld [vmem:[%s253 + $0x14] sm:$0xf]
        %v303 = vld [vmem:[%s253 + $0x18] sm:$0xf]
        %v304 = vld [vmem:[%s253 + $0x1c] sm:$0xf]
        %v305 = vld [vmem:[%s253 + $0x20] sm:$0xf]
        %v306 = vld [vmem:[%s253 + $0x24] sm:$0xf]
        %v307 = vld [vmem:[%s253 + $0x28] sm:$0xf]
        %v308 = vld [vmem:[%s253 + $0x2c] sm:$0xf]
        %v309 = vld [vmem:[%s253 + $0x30] sm:$0xf]
        %v310 = vld [vmem:[%s253 + $0x34] sm:$0xf]
        %v311 = vld [vmem:[%s253 + $0x38] sm:$0xf]
        %v312 = vld [vmem:[%s253 + $0x3c] sm:$0xf]
        %v313 = vld [vmem:[%s253 + $0x40] sm:$0xf]
        %v314 = vld [vmem:[%s253 + $0x44] sm:$0xf]
        %v315 = vld [vmem:[%s253 + $0x48] sm:$0xf]
        %v316 = vld [vmem:[%s253 + $0x4c] sm:$0xf]
        %v317 = vld [vmem:[%s253 + $0x50] sm:$0xf]
        %v318 = vld [vmem:[%s253 + $0x54] sm:$0xf]
        %v319 = vld [vmem:[%s253 + $0x58] sm:$0xf]
        %v320 = vld [vmem:[%s253 + $0x5c] sm:$0xf]
        %v321 = vld [vmem:[%s253 + $0x60] sm:$0xf]
        %v322 = vld [vmem:[%s253 + $0x64] sm:$0xf]
        %v323 = vld [vmem:[%s253 + $0x68] sm:$0xf]
        %v324 = vld [vmem:[%s253 + $0x6c] sm:$0xf]
        %v325 = vld [vmem:[%s253 + $0x70] sm:$0xf]
        %v326 = vld [vmem:[%s253 + $0x74] sm:$0xf]
        %v327 = vld [vmem:[%s253 + $0x78] sm:$0xf]
        %v328 = vld [vmem:[%s253 + $0x7c] sm:$0xf]
        %v329 = vld [vmem:[%s253 + $0x80] sm:$0xf]
        %v330 = vld [vmem:[%s253 + $0x84] sm:$0xf]
        %v331 = vld [vmem:[%s253 + $0x88] sm:$0xf]
        %v332 = vld [vmem:[%s253 + $0x8c] sm:$0xf]
        %v333 = vld [vmem:[%s253 + $0x90] sm:$0xf]
        %v334 = vld [vmem:[%s253 + $0x94] sm:$0xf]
        %v335 = vld [vmem:[%s253 + $0x98] sm:$0xf]
        %v336 = vld [vmem:[%s253 + $0x9c] sm:$0xf]
        %v337 = vld [vmem:[%s253 + $0xa0] sm:$0xf]
        %v338 = vld [vmem:[%s253 + $0xa4] sm:$0xf]
        %v339 = vld [vmem:[%s253 + $0xa8] sm:$0xf]
        %v340 = vld [vmem:[%s253 + $0xac] sm:$0xf]
        %v341 = vld [vmem:[%s253 + $0xb0] sm:$0xf]
        %v342 = vld [vmem:[%s253 + $0xb4] sm:$0xf]
        %v343 = vld [vmem:[%s253 + $0xb8] sm:$0xf]
        %v344 = vld [vmem:[%s253 + $0xbc] sm:$0xf]
        %v357 = vunpack.c.l.b16 %v285
        %v358 = vunpack.c.h.b16 %v285
        %v359 = vunpack.c.l.b16 %v286
        %v360 = vunpack.c.l.b16 %v287
        %v361 = vunpack.c.h.b16 %v287
        %v362 = vunpack.c.l.b16 %v288
        %v363 = vunpack.c.l.b16 %v289
        %v364 = vunpack.c.h.b16 %v289
        %v365 = vunpack.c.l.b16 %v290
        %v366 = vunpack.c.l.b16 %v291
        %v367 = vunpack.c.h.b16 %v291
        %v368 = vunpack.c.l.b16 %v292
        %v369 = vunpack.c.l.b16 %v293
        %v370 = vunpack.c.h.b16 %v293
        %v371 = vunpack.c.l.b16 %v294
        %v372 = vunpack.c.l.b16 %v295
        %v373 = vunpack.c.h.b16 %v295
        %v374 = vunpack.c.l.b16 %v296
        %v375 = vpack.c.b16 %v360, %v357
        %v376 = vpack.c.b16 %v361, %v358
        %v377 = vpack.c.b16 %v362, %v359
        %v378 = vpack.c.b16 %v366, %v363
        %v379 = vpack.c.b16 %v367, %v364
        %v380 = vpack.c.b16 %v368, %v365
        %v381 = vpack.c.b16 %v372, %v369
        %v382 = vpack.c.b16 %v373, %v370
        %v383 = vpack.c.b16 %v374, %v371
        %v441 = vunpack.c.l.b16 %v297
        %v442 = vunpack.c.l.b16 %v298
        %v443 = vunpack.c.l.b16 %v299
        %v444 = vunpack.c.l.b16 %v300
        %v445 = vunpack.c.l.b16 %v301
        %v446 = vunpack.c.l.b16 %v302
        %v447 = vunpack.c.l.b16 %v303
        %v448 = vunpack.c.l.b16 %v304
        %v449 = vunpack.c.l.b16 %v305
        %v450 = vunpack.c.l.b16 %v306
        %v451 = vunpack.c.l.b16 %v307
        %v452 = vunpack.c.l.b16 %v308
        %v453 = vunpack.c.l.b16 %v309
        %v454 = vunpack.c.l.b16 %v310
        %v455 = vunpack.c.l.b16 %v311
        %v456 = vunpack.c.l.b16 %v312
        %v457 = vunpack.c.l.b16 %v313
        %v458 = vunpack.c.l.b16 %v314
        %v459 = vunpack.c.l.b16 %v315
        %v460 = vunpack.c.l.b16 %v316
        %v461 = vunpack.c.l.b16 %v317
        %v462 = vunpack.c.l.b16 %v318
        %v463 = vunpack.c.l.b16 %v319
        %v464 = vunpack.c.l.b16 %v320
        %v465 = vunpack.c.l.b16 %v321
        %v466 = vunpack.c.l.b16 %v322
        %v467 = vunpack.c.l.b16 %v323
        %v468 = vunpack.c.l.b16 %v324
        %v469 = vunpack.c.l.b16 %v325
        %v470 = vunpack.c.l.b16 %v326
        %v471 = vunpack.c.l.b16 %v327
        %v472 = vunpack.c.l.b16 %v328
        %v473 = vunpack.c.l.b16 %v329
        %v474 = vunpack.c.l.b16 %v330
        %v475 = vunpack.c.l.b16 %v331
        %v476 = vunpack.c.l.b16 %v332
        %v477 = vunpack.c.l.b16 %v333
        %v478 = vunpack.c.l.b16 %v334
        %v479 = vunpack.c.l.b16 %v335
        %v480 = vunpack.c.l.b16 %v336
        %v481 = vunpack.c.l.b16 %v337
        %v482 = vunpack.c.l.b16 %v338
        %v483 = vunpack.c.l.b16 %v339
        %v484 = vunpack.c.l.b16 %v340
        %v485 = vunpack.c.l.b16 %v341
        %v486 = vunpack.c.l.b16 %v342
        %v487 = vunpack.c.l.b16 %v343
        %v488 = vunpack.c.l.b16 %v344
        %v489 = vpack.c.b16 %v442, %v441
        %v490 = vpack.c.b16 %v444, %v443
        %v491 = vpack.c.b16 %v446, %v445
        %v492 = vpack.c.b16 %v448, %v447
        %v493 = vpack.c.b16 %v450, %v449
        %v494 = vpack.c.b16 %v452, %v451
        %v495 = vpack.c.b16 %v454, %v453
        %v496 = vpack.c.b16 %v456, %v455
        %v497 = vpack.c.b16 %v458, %v457
        %v498 = vpack.c.b16 %v460, %v459
        %v499 = vpack.c.b16 %v462, %v461
        %v500 = vpack.c.b16 %v464, %v463
        %v501 = vpack.c.b16 %v466, %v465
        %v502 = vpack.c.b16 %v468, %v467
        %v503 = vpack.c.b16 %v470, %v469
        %v504 = vpack.c.b16 %v472, %v471
        %v505 = vpack.c.b16 %v474, %v473
        %v506 = vpack.c.b16 %v476, %v475
        %v507 = vpack.c.b16 %v478, %v477
        %v508 = vpack.c.b16 %v480, %v479
        %v509 = vpack.c.b16 %v482, %v481
        %v510 = vpack.c.b16 %v484, %v483
        %v511 = vpack.c.b16 %v486, %v485
        %v512 = vpack.c.b16 %v488, %v487
        %537 = vmatprep.subr.bf16.mxu0 0
        %538 = vmatpush1.bf16.msra.mxu0 %v496
        %539 = vmatprep.subr.bf16.mxu0 0
        %540 = vmatpush1.bf16.msra.mxu0 %v495
        %541 = vmatprep.subr.bf16.mxu0 0
        %542 = vmatpush1.bf16.msra.mxu0 %v494
        %543 = vmatprep.subr.bf16.mxu0 0
        %544 = vmatpush1.bf16.msra.mxu0 %v493
        %545 = vmatprep.subr.bf16.mxu0 0
        %546 = vmatpush1.bf16.msra.mxu0 %v492
        %547 = vmatprep.subr.bf16.mxu0 0
        %548 = vmatpush1.bf16.msra.mxu0 %v491
        %549 = vmatprep.subr.bf16.mxu0 0
        %550 = vmatpush1.bf16.msra.mxu0 %v490
        %551 = vmatprep.subr.bf16.mxu0 0
        %552 = vmatpush1.bf16.msra.mxu0 %v489
        %553 = vmatprep.subr.bf16.mxu0 0
        %554 = vmatpush2.bf16.msra.mxu0 %v504
        %555 = vmatprep.subr.bf16.mxu0 0
        %556 = vmatpush2.bf16.msra.mxu0 %v503
        %557 = vmatprep.subr.bf16.mxu0 0
        %558 = vmatpush2.bf16.msra.mxu0 %v502
        %559 = vmatprep.subr.bf16.mxu0 0
        %560 = vmatpush2.bf16.msra.mxu0 %v501
        %561 = vmatprep.subr.bf16.mxu0 0
        %562 = vmatpush2.bf16.msra.mxu0 %v500
        %563 = vmatprep.subr.bf16.mxu0 0
        %564 = vmatpush2.bf16.msra.mxu0 %v499
        %565 = vmatprep.subr.bf16.mxu0 0
        %566 = vmatpush2.bf16.msra.mxu0 %v498
        %567 = vmatprep.subr.bf16.mxu0 0
        %568 = vmatpush2.bf16.msra.mxu0 %v497
        %569 = vmatprep.mubr.bf16.mxu0 %v376
        %570 = vmatmul.mubr.bf16.gmra.mxu0 %v375
        %v571 = vpop.f32.mrf.mxu0
        %v572 = vadd.f32 0.0, %v571
        %v573 = vpop.f32.mrf.mxu0
        %v574 = vpop.f32.mrf.mxu0
        %v575 = vadd.f32 0.0, %v574
        %v576 = vpop.f32.mrf.mxu0
        %577 = vmatprep.mubr.bf16.mxu0 %v379
        %578 = vmatmul.mubr.bf16.gmra.mxu0 %v378
        %v579 = vpop.f32.mrf.mxu0
        %v580 = vadd.f32 0.0, %v579
        %v581 = vpop.f32.mrf.mxu0
        %v582 = vpop.f32.mrf.mxu0
        %v583 = vadd.f32 0.0, %v582
        %v584 = vpop.f32.mrf.mxu0
        %585 = vmatprep.mubr.bf16.mxu0 %v382
        %586 = vmatmul.mubr.bf16.gmra.mxu0 %v381
        %v587 = vpop.f32.mrf.mxu0
        %v588 = vadd.f32 0.0, %v587
        %v589 = vpop.f32.mrf.mxu0
        %v590 = vpop.f32.mrf.mxu0
        %v591 = vadd.f32 0.0, %v590
        %v592 = vpop.f32.mrf.mxu0
        %593 = vdwg.mxu0
        %594 = vmatprep.subr.bf16.mxu0 0
        %595 = vmatpush1.bf16.msra.mxu0 %v512
        %596 = vmatprep.subr.bf16.mxu0 0
        %597 = vmatpush1.bf16.msra.mxu0 %v511
        %598 = vmatprep.subr.bf16.mxu0 0
        %599 = vmatpush1.bf16.msra.mxu0 %v510
        %600 = vmatprep.subr.bf16.mxu0 0
        %601 = vmatpush1.bf16.msra.mxu0 %v509
        %602 = vmatprep.subr.bf16.mxu0 0
        %603 = vmatpush1.bf16.msra.mxu0 %v508
        %604 = vmatprep.subr.bf16.mxu0 0
        %605 = vmatpush1.bf16.msra.mxu0 %v507
        %606 = vmatprep.subr.bf16.mxu0 0
        %607 = vmatpush1.bf16.msra.mxu0 %v506
        %608 = vmatprep.subr.bf16.mxu0 0
        %609 = vmatpush1.bf16.msra.mxu0 %v505
        %610 = vmatprep.subr.bf16.mxu0 0
        %611 = vmatpush2.bf16.msra.mxu0 0
        %612 = vmatprep.subr.bf16.mxu0 0
        %613 = vmatpush2.bf16.msra.mxu0 0
        %614 = vmatprep.subr.bf16.mxu0 0
        %615 = vmatpush2.bf16.msra.mxu0 0
        %616 = vmatprep.subr.bf16.mxu0 0
        %617 = vmatpush2.bf16.msra.mxu0 0
        %618 = vmatprep.subr.bf16.mxu0 0
        %619 = vmatpush2.bf16.msra.mxu0 0
        %620 = vmatprep.subr.bf16.mxu0 0
        %621 = vmatpush2.bf16.msra.mxu0 0
        %622 = vmatprep.subr.bf16.mxu0 0
        %623 = vmatpush2.bf16.msra.mxu0 0
        %624 = vmatprep.subr.bf16.mxu0 0
        %625 = vmatpush2.bf16.msra.mxu0 0
        %626 = vmatprep.mubr.bf16.mxu0 0
        %627 = vmatmul.mubr.bf16.gmra.mxu0 %v377
        %v628 = vpop.f32.mrf.mxu0
        %v629 = vadd.f32 %v572, %v628
        %v630 = vpop.f32.mrf.mxu0
        %v631 = vpop.f32.mrf.mxu0
        %v632 = vadd.f32 %v575, %v631
        %v633 = vpop.f32.mrf.mxu0
        %634 = vmatprep.mubr.bf16.mxu0 0
        %635 = vmatmul.mubr.bf16.gmra.mxu0 %v380
        %v636 = vpop.f32.mrf.mxu0
        %v637 = vadd.f32 %v580, %v636
        %v638 = vpop.f32.mrf.mxu0
        %v639 = vpop.f32.mrf.mxu0
        %v640 = vadd.f32 %v583, %v639
        %v641 = vpop.f32.mrf.mxu0
        %642 = vmatprep.mubr.bf16.mxu0 0
        %643 = vmatmul.mubr.bf16.gmra.mxu0 %v383
        %v644 = vpop.f32.mrf.mxu0
        %v645 = vadd.f32 %v588, %v644
        %v646 = vpop.f32.mrf.mxu0
        %v647 = vpop.f32.mrf.mxu0
        %v648 = vadd.f32 %v591, %v647
        %v649 = vpop.f32.mrf.mxu0
        %650 = vdwg.mxu0
        %651 = vst [vmem:[%s264] sm:$0xff] %v629
        %652 = vst [vmem:[%s264 + $0x8] sm:$0xff] %v632
        %653 = vst [vmem:[%s264 + $0x10] sm:$0xff] %v637
        %654 = vst [vmem:[%s264 + $0x18] sm:$0xff] %v640
        %655 = vst [vmem:[%s264 + $0x20] sm:$0xff] %v645
        %656 = vst [vmem:[%s264 + $0x28] sm:$0xff] %v648
      $region36: #{_lambda_.1} parent=27 // pred_fallthru
        _
      %p657 = scmp.gt.s32.totalorder %s32, 0
      %p658 = scmp.lt.s32.totalorder %s32, %s267
      %p659 = pnand %p657, %p658
      %p660 = pneg %p659
      // Predicated region
      $region37: #{_lambda_.1} parent=27 // pred_check
        _
      $region38: #{_lambda_.1} parent=27 // pred_check_branch
        %662 = sbr.rel (%p659) target = $region40
      $region39: #{_lambda_.1} parent=27 // pred_region
        %v663 = vld [vmem:[%s264] sm:$0xff]
        %v664 = vld [vmem:[%s264 + $0x8] sm:$0xff]
        %v665 = vld [vmem:[%s264 + $0x10] sm:$0xff]
        %v666 = vld [vmem:[%s264 + $0x18] sm:$0xff]
        %v667 = vld [vmem:[%s264 + $0x20] sm:$0xff]
        %v668 = vld [vmem:[%s264 + $0x28] sm:$0xff]
        %v669 = vld [vmem:[%s239] sm:$0xff]
        %v670 = vld [vmem:[%s239 + $0x8] sm:$0xf]
        %v671 = vld [vmem:[%s239 + $0xc] sm:$0xff]
        %v672 = vld [vmem:[%s239 + $0x14] sm:$0xf]
        %v673 = vld [vmem:[%s239 + $0x18] sm:$0xff]
        %v674 = vld [vmem:[%s239 + $0x20] sm:$0xf]
        %v675 = vld [vmem:[%s239 + $0x24] sm:$0xff]
        %v676 = vld [vmem:[%s239 + $0x2c] sm:$0xf]
        %v677 = vld [vmem:[%s239 + $0x30] sm:$0xff]
        %v678 = vld [vmem:[%s239 + $0x38] sm:$0xf]
        %v679 = vld [vmem:[%s239 + $0x3c] sm:$0xff]
        %v680 = vld [vmem:[%s239 + $0x44] sm:$0xf]
        %v681 = vld [vmem:[%s253] sm:$0xf]
        %v682 = vld [vmem:[%s253 + $0x4] sm:$0xf]
        %v683 = vld [vmem:[%s253 + $0x8] sm:$0xf]
        %v684 = vld [vmem:[%s253 + $0xc] sm:$0xf]
        %v685 = vld [vmem:[%s253 + $0x10] sm:$0xf]
        %v686 = vld [vmem:[%s253 + $0x14] sm:$0xf]
        %v687 = vld [vmem:[%s253 + $0x18] sm:$0xf]
        %v688 = vld [vmem:[%s253 + $0x1c] sm:$0xf]
        %v689 = vld [vmem:[%s253 + $0x20] sm:$0xf]
        %v690 = vld [vmem:[%s253 + $0x24] sm:$0xf]
        %v691 = vld [vmem:[%s253 + $0x28] sm:$0xf]
        %v692 = vld [vmem:[%s253 + $0x2c] sm:$0xf]
        %v693 = vld [vmem:[%s253 + $0x30] sm:$0xf]
        %v694 = vld [vmem:[%s253 + $0x34] sm:$0xf]
        %v695 = vld [vmem:[%s253 + $0x38] sm:$0xf]
        %v696 = vld [vmem:[%s253 + $0x3c] sm:$0xf]
        %v697 = vld [vmem:[%s253 + $0x40] sm:$0xf]
        %v698 = vld [vmem:[%s253 + $0x44] sm:$0xf]
        %v699 = vld [vmem:[%s253 + $0x48] sm:$0xf]
        %v700 = vld [vmem:[%s253 + $0x4c] sm:$0xf]
        %v701 = vld [vmem:[%s253 + $0x50] sm:$0xf]
        %v702 = vld [vmem:[%s253 + $0x54] sm:$0xf]
        %v703 = vld [vmem:[%s253 + $0x58] sm:$0xf]
        %v704 = vld [vmem:[%s253 + $0x5c] sm:$0xf]
        %v705 = vld [vmem:[%s253 + $0x60] sm:$0xf]
        %v706 = vld [vmem:[%s253 + $0x64] sm:$0xf]
        %v707 = vld [vmem:[%s253 + $0x68] sm:$0xf]
        %v708 = vld [vmem:[%s253 + $0x6c] sm:$0xf]
        %v709 = vld [vmem:[%s253 + $0x70] sm:$0xf]
        %v710 = vld [vmem:[%s253 + $0x74] sm:$0xf]
        %v711 = vld [vmem:[%s253 + $0x78] sm:$0xf]
        %v712 = vld [vmem:[%s253 + $0x7c] sm:$0xf]
        %v713 = vld [vmem:[%s253 + $0x80] sm:$0xf]
        %v714 = vld [vmem:[%s253 + $0x84] sm:$0xf]
        %v715 = vld [vmem:[%s253 + $0x88] sm:$0xf]
        %v716 = vld [vmem:[%s253 + $0x8c] sm:$0xf]
        %v717 = vld [vmem:[%s253 + $0x90] sm:$0xf]
        %v718 = vld [vmem:[%s253 + $0x94] sm:$0xf]
        %v719 = vld [vmem:[%s253 + $0x98] sm:$0xf]
        %v720 = vld [vmem:[%s253 + $0x9c] sm:$0xf]
        %v721 = vld [vmem:[%s253 + $0xa0] sm:$0xf]
        %v722 = vld [vmem:[%s253 + $0xa4] sm:$0xf]
        %v723 = vld [vmem:[%s253 + $0xa8] sm:$0xf]
        %v724 = vld [vmem:[%s253 + $0xac] sm:$0xf]
        %v725 = vld [vmem:[%s253 + $0xb0] sm:$0xf]
        %v726 = vld [vmem:[%s253 + $0xb4] sm:$0xf]
        %v727 = vld [vmem:[%s253 + $0xb8] sm:$0xf]
        %v728 = vld [vmem:[%s253 + $0xbc] sm:$0xf]
        %v741 = vunpack.c.l.b16 %v669
        %v742 = vunpack.c.h.b16 %v669
        %v743 = vunpack.c.l.b16 %v670
        %v744 = vunpack.c.l.b16 %v671
        %v745 = vunpack.c.h.b16 %v671
        %v746 = vunpack.c.l.b16 %v672
        %v747 = vunpack.c.l.b16 %v673
        %v748 = vunpack.c.h.b16 %v673
        %v749 = vunpack.c.l.b16 %v674
        %v750 = vunpack.c.l.b16 %v675
        %v751 = vunpack.c.h.b16 %v675
        %v752 = vunpack.c.l.b16 %v676
        %v753 = vunpack.c.l.b16 %v677
        %v754 = vunpack.c.h.b16 %v677
        %v755 = vunpack.c.l.b16 %v678
        %v756 = vunpack.c.l.b16 %v679
        %v757 = vunpack.c.h.b16 %v679
        %v758 = vunpack.c.l.b16 %v680
        %v759 = vpack.c.b16 %v744, %v741
        %v760 = vpack.c.b16 %v745, %v742
        %v761 = vpack.c.b16 %v746, %v743
        %v762 = vpack.c.b16 %v750, %v747
        %v763 = vpack.c.b16 %v751, %v748
        %v764 = vpack.c.b16 %v752, %v749
        %v765 = vpack.c.b16 %v756, %v753
        %v766 = vpack.c.b16 %v757, %v754
        %v767 = vpack.c.b16 %v758, %v755
        %v825 = vunpack.c.l.b16 %v681
        %v826 = vunpack.c.l.b16 %v682
        %v827 = vunpack.c.l.b16 %v683
        %v828 = vunpack.c.l.b16 %v684
        %v829 = vunpack.c.l.b16 %v685
        %v830 = vunpack.c.l.b16 %v686
        %v831 = vunpack.c.l.b16 %v687
        %v832 = vunpack.c.l.b16 %v688
        %v833 = vunpack.c.l.b16 %v689
        %v834 = vunpack.c.l.b16 %v690
        %v835 = vunpack.c.l.b16 %v691
        %v836 = vunpack.c.l.b16 %v692
        %v837 = vunpack.c.l.b16 %v693
        %v838 = vunpack.c.l.b16 %v694
        %v839 = vunpack.c.l.b16 %v695
        %v840 = vunpack.c.l.b16 %v696
        %v841 = vunpack.c.l.b16 %v697
        %v842 = vunpack.c.l.b16 %v698
        %v843 = vunpack.c.l.b16 %v699
        %v844 = vunpack.c.l.b16 %v700
        %v845 = vunpack.c.l.b16 %v701
        %v846 = vunpack.c.l.b16 %v702
        %v847 = vunpack.c.l.b16 %v703
        %v848 = vunpack.c.l.b16 %v704
        %v849 = vunpack.c.l.b16 %v705
        %v850 = vunpack.c.l.b16 %v706
        %v851 = vunpack.c.l.b16 %v707
        %v852 = vunpack.c.l.b16 %v708
        %v853 = vunpack.c.l.b16 %v709
        %v854 = vunpack.c.l.b16 %v710
        %v855 = vunpack.c.l.b16 %v711
        %v856 = vunpack.c.l.b16 %v712
        %v857 = vunpack.c.l.b16 %v713
        %v858 = vunpack.c.l.b16 %v714
        %v859 = vunpack.c.l.b16 %v715
        %v860 = vunpack.c.l.b16 %v716
        %v861 = vunpack.c.l.b16 %v717
        %v862 = vunpack.c.l.b16 %v718
        %v863 = vunpack.c.l.b16 %v719
        %v864 = vunpack.c.l.b16 %v720
        %v865 = vunpack.c.l.b16 %v721
        %v866 = vunpack.c.l.b16 %v722
        %v867 = vunpack.c.l.b16 %v723
        %v868 = vunpack.c.l.b16 %v724
        %v869 = vunpack.c.l.b16 %v725
        %v870 = vunpack.c.l.b16 %v726
        %v871 = vunpack.c.l.b16 %v727
        %v872 = vunpack.c.l.b16 %v728
        %v873 = vpack.c.b16 %v826, %v825
        %v874 = vpack.c.b16 %v828, %v827
        %v875 = vpack.c.b16 %v830, %v829
        %v876 = vpack.c.b16 %v832, %v831
        %v877 = vpack.c.b16 %v834, %v833
        %v878 = vpack.c.b16 %v836, %v835
        %v879 = vpack.c.b16 %v838, %v837
        %v880 = vpack.c.b16 %v840, %v839
        %v881 = vpack.c.b16 %v842, %v841
        %v882 = vpack.c.b16 %v844, %v843
        %v883 = vpack.c.b16 %v846, %v845
        %v884 = vpack.c.b16 %v848, %v847
        %v885 = vpack.c.b16 %v850, %v849
        %v886 = vpack.c.b16 %v852, %v851
        %v887 = vpack.c.b16 %v854, %v853
        %v888 = vpack.c.b16 %v856, %v855
        %v889 = vpack.c.b16 %v858, %v857
        %v890 = vpack.c.b16 %v860, %v859
        %v891 = vpack.c.b16 %v862, %v861
        %v892 = vpack.c.b16 %v864, %v863
        %v893 = vpack.c.b16 %v866, %v865
        %v894 = vpack.c.b16 %v868, %v867
        %v895 = vpack.c.b16 %v870, %v869
        %v896 = vpack.c.b16 %v872, %v871
        %921 = vmatprep.subr.bf16.mxu0 0
        %922 = vmatpush1.bf16.msra.mxu0 %v880
        %923 = vmatprep.subr.bf16.mxu0 0
        %924 = vmatpush1.bf16.msra.mxu0 %v879
        %925 = vmatprep.subr.bf16.mxu0 0
        %926 = vmatpush1.bf16.msra.mxu0 %v878
        %927 = vmatprep.subr.bf16.mxu0 0
        %928 = vmatpush1.bf16.msra.mxu0 %v877
        %929 = vmatprep.subr.bf16.mxu0 0
        %930 = vmatpush1.bf16.msra.mxu0 %v876
        %931 = vmatprep.subr.bf16.mxu0 0
        %932 = vmatpush1.bf16.msra.mxu0 %v875
        %933 = vmatprep.subr.bf16.mxu0 0
        %934 = vmatpush1.bf16.msra.mxu0 %v874
        %935 = vmatprep.subr.bf16.mxu0 0
        %936 = vmatpush1.bf16.msra.mxu0 %v873
        %937 = vmatprep.subr.bf16.mxu0 0
        %938 = vmatpush2.bf16.msra.mxu0 %v888
        %939 = vmatprep.subr.bf16.mxu0 0
        %940 = vmatpush2.bf16.msra.mxu0 %v887
        %941 = vmatprep.subr.bf16.mxu0 0
        %942 = vmatpush2.bf16.msra.mxu0 %v886
        %943 = vmatprep.subr.bf16.mxu0 0
        %944 = vmatpush2.bf16.msra.mxu0 %v885
        %945 = vmatprep.subr.bf16.mxu0 0
        %946 = vmatpush2.bf16.msra.mxu0 %v884
        %947 = vmatprep.subr.bf16.mxu0 0
        %948 = vmatpush2.bf16.msra.mxu0 %v883
        %949 = vmatprep.subr.bf16.mxu0 0
        %950 = vmatpush2.bf16.msra.mxu0 %v882
        %951 = vmatprep.subr.bf16.mxu0 0
        %952 = vmatpush2.bf16.msra.mxu0 %v881
        %953 = vmatprep.mubr.bf16.mxu0 %v760
        %954 = vmatmul.mubr.bf16.gmra.mxu0 %v759
        %v955 = vpop.f32.mrf.mxu0
        %v956 = vadd.f32 0.0, %v955
        %v957 = vpop.f32.mrf.mxu0
        %v958 = vpop.f32.mrf.mxu0
        %v959 = vadd.f32 0.0, %v958
        %v960 = vpop.f32.mrf.mxu0
        %961 = vmatprep.mubr.bf16.mxu0 %v763
        %962 = vmatmul.mubr.bf16.gmra.mxu0 %v762
        %v963 = vpop.f32.mrf.mxu0
        %v964 = vadd.f32 0.0, %v963
        %v965 = vpop.f32.mrf.mxu0
        %v966 = vpop.f32.mrf.mxu0
        %v967 = vadd.f32 0.0, %v966
        %v968 = vpop.f32.mrf.mxu0
        %969 = vmatprep.mubr.bf16.mxu0 %v766
        %970 = vmatmul.mubr.bf16.gmra.mxu0 %v765
        %v971 = vpop.f32.mrf.mxu0
        %v972 = vadd.f32 0.0, %v971
        %v973 = vpop.f32.mrf.mxu0
        %v974 = vpop.f32.mrf.mxu0
        %v975 = vadd.f32 0.0, %v974
        %v976 = vpop.f32.mrf.mxu0
        %977 = vdwg.mxu0
        %978 = vmatprep.subr.bf16.mxu0 0
        %979 = vmatpush1.bf16.msra.mxu0 %v896
        %980 = vmatprep.subr.bf16.mxu0 0
        %981 = vmatpush1.bf16.msra.mxu0 %v895
        %982 = vmatprep.subr.bf16.mxu0 0
        %983 = vmatpush1.bf16.msra.mxu0 %v894
        %984 = vmatprep.subr.bf16.mxu0 0
        %985 = vmatpush1.bf16.msra.mxu0 %v893
        %986 = vmatprep.subr.bf16.mxu0 0
        %987 = vmatpush1.bf16.msra.mxu0 %v892
        %988 = vmatprep.subr.bf16.mxu0 0
        %989 = vmatpush1.bf16.msra.mxu0 %v891
        %990 = vmatprep.subr.bf16.mxu0 0
        %991 = vmatpush1.bf16.msra.mxu0 %v890
        %992 = vmatprep.subr.bf16.mxu0 0
        %993 = vmatpush1.bf16.msra.mxu0 %v889
        %994 = vmatprep.subr.bf16.mxu0 0
        %995 = vmatpush2.bf16.msra.mxu0 0
        %996 = vmatprep.subr.bf16.mxu0 0
        %997 = vmatpush2.bf16.msra.mxu0 0
        %998 = vmatprep.subr.bf16.mxu0 0
        %999 = vmatpush2.bf16.msra.mxu0 0
        %1000 = vmatprep.subr.bf16.mxu0 0
        %1001 = vmatpush2.bf16.msra.mxu0 0
        %1002 = vmatprep.subr.bf16.mxu0 0
        %1003 = vmatpush2.bf16.msra.mxu0 0
        %1004 = vmatprep.subr.bf16.mxu0 0
        %1005 = vmatpush2.bf16.msra.mxu0 0
        %1006 = vmatprep.subr.bf16.mxu0 0
        %1007 = vmatpush2.bf16.msra.mxu0 0
        %1008 = vmatprep.subr.bf16.mxu0 0
        %1009 = vmatpush2.bf16.msra.mxu0 0
        %1010 = vmatprep.mubr.bf16.mxu0 0
        %1011 = vmatmul.mubr.bf16.gmra.mxu0 %v761
        %v1012 = vpop.f32.mrf.mxu0
        %v1013 = vadd.f32 %v956, %v1012
        %v1014 = vpop.f32.mrf.mxu0
        %v1015 = vpop.f32.mrf.mxu0
        %v1016 = vadd.f32 %v959, %v1015
        %v1017 = vpop.f32.mrf.mxu0
        %1018 = vmatprep.mubr.bf16.mxu0 0
        %1019 = vmatmul.mubr.bf16.gmra.mxu0 %v764
        %v1020 = vpop.f32.mrf.mxu0
        %v1021 = vadd.f32 %v964, %v1020
        %v1022 = vpop.f32.mrf.mxu0
        %v1023 = vpop.f32.mrf.mxu0
        %v1024 = vadd.f32 %v967, %v1023
        %v1025 = vpop.f32.mrf.mxu0
        %1026 = vmatprep.mubr.bf16.mxu0 0
        %1027 = vmatmul.mubr.bf16.gmra.mxu0 %v767
        %v1028 = vpop.f32.mrf.mxu0
        %v1029 = vadd.f32 %v972, %v1028
        %v1030 = vpop.f32.mrf.mxu0
        %v1031 = vpop.f32.mrf.mxu0
        %v1032 = vadd.f32 %v975, %v1031
        %v1033 = vpop.f32.mrf.mxu0
        %1034 = vdwg.mxu0
        %v1035 = vadd.f32 %v663, %v1013
        %v1036 = vadd.f32 %v664, %v1016
        %v1037 = vadd.f32 %v665, %v1021
        %v1038 = vadd.f32 %v666, %v1024
        %v1039 = vadd.f32 %v667, %v1029
        %v1040 = vadd.f32 %v668, %v1032
        %1041 = vst [vmem:[%s264] sm:$0xff] %v1035
        %1042 = vst [vmem:[%s264 + $0x8] sm:$0xff] %v1036
        %1043 = vst [vmem:[%s264 + $0x10] sm:$0xff] %v1037
        %1044 = vst [vmem:[%s264 + $0x18] sm:$0xff] %v1038
        %1045 = vst [vmem:[%s264 + $0x20] sm:$0xff] %v1039
        %1046 = vst [vmem:[%s264 + $0x28] sm:$0xff] %v1040
      $region40: #{_lambda_.1} parent=27 // pred_fallthru
        _
      %s1047 = smul.u32 6, %s30
      %p1048 = scmp.lt.s32.totalorder %s1047, 11
      %s1049 = scalar_select %p1048, %s1047, 11
      %p1050 = scmp.lt.s32.totalorder %s31, 0
      %s1051 = scalar_select %p1050, %s31, 0
      %s1052 = sadd.s32 %s1051, %s1049
      %s1053 = smul.addr %s1052, 8
      %s1054 = scalar_lea.vmem %s4, %s1053
      // Predicated region
      $region41: #{_lambda_.1} parent=27 // pred_check
        %p1055 = pneg %p128
      $region42: #{_lambda_.1} parent=27 // pred_check_branch
        %1057 = sbr.rel (%p1055) target = $region44
      $region43: #{_lambda_.1} parent=27 // pred_region
        %s1058 = smul.u32 6, %s30
      $region44: #{_lambda_.1} parent=27 // pred_fallthru
        _
    $region28: #{_lambda_.1} parent=5 // pred_fallthru
      _
    %p1059 = scmp.le.s32.totalorder 2, %s20
    // Predicated region
    $region45: #{_lambda_.1} parent=5 // pred_check
      %p1060 = pneg %p1059
    $region46: #{_lambda_.1} parent=5 // pred_check_branch
      %1062 = sbr.rel (%p1060) target = $region48
    $region47: #{_lambda_.1} parent=5 // pred_region
      %s1063 = ssub.s32 %s20, 2
      // Predicated region
      $region49: #{_lambda_.1} parent=47 // pred_check
        %p1064 = pneg %p134
      $region50: #{_lambda_.1} parent=47 // pred_check_branch
        %1066 = sbr.rel (%p1064) target = $region52
      $region51: #{_lambda_.1} parent=47 // pred_region
        %s1067 = smul.u32 6, %s33
        %p1068 = scmp.lt.s32.totalorder %s1067, 11
        %s1069 = scalar_select %p1068, %s1067, 11
        %p1070 = scmp.lt.s32.totalorder %s34, 0
        %s1071 = scalar_select %p1070, %s34, 0
        %s1072 = sadd.s32 %s1071, %s1069
        %s1073 = smul.addr %s1072, 8
        %s1074 = scalar_lea.vmem %s4, %s1073
      $region52: #{_lambda_.1} parent=47 // pred_fallthru
        _
    $region48: #{_lambda_.1} parent=5 // pred_fallthru
      _
  $region6: #{_lambda_.1} parent=0 // loop_footer
    %s24 = sadd.s32 1, %s20
  $region7: #{_lambda_.1} parent=0 // loop_footer_branch
    %19 = sbr.rel target = $region3
  $region8: #{_lambda_.1} parent=0 // loop_exit
    _

</llo_original>
